<compile_context>
chip_gen: v7x
topology: tpu7x:2x2x1
jax: 0.10.0
libtpu: 0.0.40
codegen_flags: <defaults>
</compile_context>

<pallas_src>
import functools

import jax
import jax.numpy as jnp
from jax.experimental import pallas as pl
from jax.experimental.pallas import tpu as pltpu

REG_LOSS_WEIGHT = 2.0   # RTMDetLoss(reg_loss_weight=2)
QFL_BETA = 2.0          # QualityFocalLoss beta (==2 -> d*d below)
EPS = 1e-7


def _rtmdet_loss_kernel(pred_bb_ref, tgt_bb_ref, logits_ref, labels_ref,
                        out_ref, acc_reg, acc_npos, acc_qfl,
                        *, n_valid, block_n, n_classes):
    ni = pl.program_id(1)
    n_tiles = pl.num_programs(1)

    @pl.when(ni == 0)
    def _init():
        acc_reg[...] = jnp.zeros_like(acc_reg)
        acc_npos[...] = jnp.zeros_like(acc_npos)
        acc_qfl[...] = jnp.zeros_like(acc_qfl)

    # ---------------- regression path: anchors on the lane axis ----------------
    pb = pred_bb_ref[0].astype(jnp.float32)          # (4, TN) xyxy, coord-major
    tb = tgt_bb_ref[0].astype(jnp.float32)           # (4, TN)
    px1, py1, px2, py2 = pb[0:1], pb[1:2], pb[2:3], pb[3:4]      # each (1, TN)
    tx1, ty1, tx2, ty2 = tb[0:1], tb[1:2], tb[2:3], tb[3:4]

    # IoU / union (GIoULoss.calc_IoU_and_union on all anchor pairs)
    p_area = (px2 - px1) * (py2 - py1)
    t_area = (tx2 - tx1) * (ty2 - ty1)
    iw = jnp.maximum(jnp.minimum(px2, tx2) - jnp.maximum(px1, tx1), 0.0)
    ih = jnp.maximum(jnp.minimum(py2, ty2) - jnp.maximum(py1, ty1), 0.0)
    inter = iw * ih
    union = p_area + t_area - inter
    iou = inter / jnp.maximum(union, EPS)            # (1, TN)

    # GIoU loss (reduction='none')
    ew = jnp.maximum(px2, tx2) - jnp.minimum(px1, tx1)
    eh = jnp.maximum(py2, ty2) - jnp.minimum(py1, ty1)
    e_area = ew * eh
    giou = iou - (e_area - union) / jnp.maximum(e_area, EPS)
    giou_loss = 1.0 - giou                           # (1, TN)

    # positive-anchor mask: targets.bboxes.sum(-1) != 0, tail padding masked out
    base = ni * block_n
    lane_idx = jax.lax.broadcasted_iota(jnp.int32, (1, block_n), 1) + base
    validf = (lane_idx < n_valid).astype(jnp.float32)            # (1, TN)
    posf = ((tx1 + ty1 + tx2 + ty2) != 0.0).astype(jnp.float32) * validf

    acc_reg[...] += posf * giou_loss
    acc_npos[...] += posf

    # --------- QFL path: classes on sublanes, anchors stay on the lanes ---------
    logits = logits_ref[0].astype(jnp.float32)       # (C, TN)
    labels = labels_ref[0]                           # (1, TN) int32, -1 = negative
    cls_iota = jax.lax.broadcasted_iota(jnp.int32, (n_classes, block_n), 0)
    onehot = (cls_iota == labels).astype(jnp.float32)            # (C, TN)
    score = onehot * iou                              # soft IoU target, (C, TN)

    sig = jax.nn.sigmoid(logits)
    # log1p(exp(-|x|)) == -log(sigmoid(|x|)): reuse sigma -> one EUP log.
    p_hi = jnp.where(logits >= 0.0, sig, 1.0 - sig)  # == sigmoid(|x|) in [0.5, 1)
    bce = jnp.maximum(logits, 0.0) - logits * score - jnp.log(p_hi)
    d = score - sig                                  # squared below -> abs redundant
    qfl = bce * d * d                                # beta == 2, (C, TN)

    # class reduction = sublane reduce (XLU); tail padding masked per anchor.
    acc_qfl[...] += validf * jnp.sum(qfl, axis=0, keepdims=True)  # (1, TN)

    # -------------------------------- finalize ---------------------------------
    @pl.when(ni == n_tiles - 1)
    def _finalize():
        reg_total = jnp.sum(acc_reg[...], axis=1, keepdims=True)             # (1, 1)
        npos = jnp.maximum(jnp.sum(acc_npos[...], axis=1, keepdims=True), 1.0)
        qfl_total = jnp.sum(acc_qfl[...], axis=1, keepdims=True)             # (1, 1)
        per_image = (REG_LOSS_WEIGHT * reg_total + qfl_total) / npos         # (1, 1)
        out_ref[...] = jnp.broadcast_to(per_image.reshape(1, 1, 1), (1, 1, 128))


def rtmdet_loss(pred_bboxes, pred_logits, tgt_bboxes, tgt_labels, *, block_n=1024):
    """RTMDet loss forward.

    pred_bboxes / tgt_bboxes : (B, N, 4) xyxy (assigned targets; zeros = negative)
    pred_logits              : (B, N, C), any float dtype (bf16 recommended)
    tgt_labels               : (B, N) int class index, negative for unassigned anchors
    """
    # TODO(synk): RTMDetLabelAssigner.assign_targets (dynamic GT<->anchor matching)
    # and RTMDetOutput.process_and_combine_layers (multi-level decode/concat) are
    # data-dependent host-side glue; assigned targets are assumed precomputed here.
    B, N, _ = pred_bboxes.shape
    C = pred_logits.shape[-1]
    assert block_n % 128 == 0, "block_n must be a multiple of 128"

    n_tiles = pl.cdiv(N, block_n)
    pad = n_tiles * block_n - N

    # anchor-on-lane layouts.
    # TODO(synk): the detection head emits (B, C, H, W) conv maps, so upstream can
    # hand these (B, 4/C/1, N) layouts over directly and skip these transposes.
    pb = jnp.transpose(pred_bboxes, (0, 2, 1))                 # (B, 4, N)
    tb = jnp.transpose(tgt_bboxes, (0, 2, 1))                  # (B, 4, N)
    lg = jnp.transpose(pred_logits, (0, 2, 1))                 # (B, C, N)
    labels = tgt_labels.astype(jnp.int32).reshape(B, 1, N)     # (B, 1, N)

    if pad:
        pb = jnp.pad(pb, ((0, 0), (0, 0), (0, pad)))
        tb = jnp.pad(tb, ((0, 0), (0, 0), (0, pad)))
        lg = jnp.pad(lg, ((0, 0), (0, 0), (0, pad)))
        labels = jnp.pad(labels, ((0, 0), (0, 0), (0, pad)), constant_values=-1)

    kernel = functools.partial(_rtmdet_loss_kernel,
                               n_valid=N, block_n=block_n, n_classes=C)

    per_image = pl.pallas_call(
        kernel,
        out_shape=jax.ShapeDtypeStruct((B, 1, 128), jnp.float32),
        grid_spec=pltpu.PrefetchScalarGridSpec(
            num_scalar_prefetch=0,
            grid=(B, n_tiles),
            in_specs=[
                pl.BlockSpec((1, 4, block_n), lambda bi, ni: (bi, 0, ni)),
                pl.BlockSpec((1, 4, block_n), lambda bi, ni: (bi, 0, ni)),
                pl.BlockSpec((1, C, block_n), lambda bi, ni: (bi, 0, ni)),
                pl.BlockSpec((1, 1, block_n), lambda bi, ni: (bi, 0, ni)),
            ],
            out_specs=pl.BlockSpec((1, 1, 128), lambda bi, ni: (bi, 0, 0)),
            scratch_shapes=[
                pltpu.VMEM((1, block_n), jnp.float32),      # reg-loss accumulator
                pltpu.VMEM((1, block_n), jnp.float32),      # n_pos accumulator
                pltpu.VMEM((1, block_n), jnp.float32),      # qfl accumulator
            ],
        ),
        compiler_params=pltpu.CompilerParams(
            dimension_semantics=("parallel", "arbitrary"),
            vmem_limit_bytes=32 * 1024 * 1024,
        ),
    )(pb, tb, lg, labels)

    return jnp.sum(per_image[:, 0, 0])


def _rtmdet_loss_ref(pred_bboxes, pred_logits, tgt_bboxes, tgt_labels):
    """Pure-JAX reference mirroring the PyTorch forward semantics."""
    pred_bboxes = pred_bboxes.astype(jnp.float32)
    tgt_bboxes = tgt_bboxes.astype(jnp.float32)
    logits = pred_logits.astype(jnp.float32)
    C = logits.shape[-1]

    px1, py1, px2, py2 = [pred_bboxes[..., i] for i in range(4)]
    tx1, ty1, tx2, ty2 = [tgt_bboxes[..., i] for i in range(4)]
    p_area = (px2 - px1) * (py2 - py1)
    t_area = (tx2 - tx1) * (ty2 - ty1)
    iw = jnp.maximum(jnp.minimum(px2, tx2) - jnp.maximum(px1, tx1), 0.0)
    ih = jnp.maximum(jnp.minimum(py2, ty2) - jnp.maximum(py1, ty1), 0.0)
    inter = iw * ih
    union = p_area + t_area - inter
    iou = inter / jnp.maximum(union, EPS)
    e_area = ((jnp.maximum(px2, tx2) - jnp.minimum(px1, tx1))
              * (jnp.maximum(py2, ty2) - jnp.minimum(py1, ty1)))
    giou = iou - (e_area - union) / jnp.maximum(e_area, EPS)
    giou_loss = 1.0 - giou

    mask = tgt_bboxes.sum(-1) != 0
    onehot = jax.nn.one_hot(tgt_labels, C, dtype=jnp.float32)  # -1 -> all zeros
    score = onehot * iou[..., None]
    sigma = jax.nn.sigmoid(logits)
    bce = (jnp.maximum(logits, 0.0) - logits * score
           + jnp.log1p(jnp.exp(-jnp.abs(logits))))
    qfl = jnp.sum(bce * jnp.abs(score - sigma) ** QFL_BETA, axis=-1)
    loss = jnp.where(mask, REG_LOSS_WEIGHT * giou_loss, 0.0) + qfl
    n_pos = jnp.maximum(mask.sum(-1).astype(jnp.float32), 1.0)
    return jnp.sum(loss.sum(-1) / n_pos)


if __name__ == "__main__":
    B, N, C = 2, 400, 16          # N not a multiple of the tile -> exercises tail mask
    key = jax.random.PRNGKey(0)
    k1, k2, k3, k4, k5, k6, k7 = jax.random.split(key, 7)

    # predicted boxes (always valid xyxy)
    cxy = jax.random.uniform(k1, (B, N, 2), minval=10.0, maxval=90.0)
    wh = jax.random.uniform(k2, (B, N, 2), minval=2.0, maxval=30.0)
    pred_bboxes = jnp.concatenate([cxy - wh / 2, cxy + wh / 2], axis=-1)

    # assigned targets: ~25% positives, zeros elsewhere (as the label assigner produces)
    pos = jax.random.uniform(k3, (B, N)) < 0.25
    tcxy = jax.random.uniform(k4, (B, N, 2), minval=10.0, maxval=90.0)
    twh = jax.random.uniform(k5, (B, N, 2), minval=2.0, maxval=30.0)
    tgt_full = jnp.concatenate([tcxy - twh / 2, tcxy + twh / 2], axis=-1)
    tgt_bboxes = jnp.where(pos[..., None], tgt_full, 0.0)

    cls_idx = jax.random.randint(k6, (B, N), 0, C)
    tgt_labels = jnp.where(pos, cls_idx, -1).astype(jnp.int32)   # int labels, -1 = negative
    pred_logits = (2.0 * jax.random.normal(k7, (B, N, C))).astype(jnp.bfloat16)

    out = rtmdet_loss(pred_bboxes, pred_logits, tgt_bboxes, tgt_labels, block_n=256)
    out = jax.block_until_ready(out)

    ref = _rtmdet_loss_ref(pred_bboxes, pred_logits, tgt_bboxes, tgt_labels)
    assert jnp.isfinite(out), "kernel produced non-finite loss"
    assert jnp.allclose(out, ref, rtol=1e-3, atol=1e-3), (out, ref)
    print("KERNEL_OK")
</pallas_src>

<mosaic_0001>
module attributes {stable_mosaic.version = 11 : i64} {
  func.func @_rtmdet_loss_kernel(%arg0: i32, %arg1: i32, %arg2: memref<1x4x256xf32, #tpu.memory_space<vmem>>, %arg3: memref<1x4x256xf32, #tpu.memory_space<vmem>>, %arg4: memref<1x16x256xbf16, #tpu.memory_space<vmem>>, %arg5: memref<1x1x256xi32, #tpu.memory_space<vmem>>, %arg6: memref<1x1x128xf32, #tpu.memory_space<vmem>>, %arg7: memref<1x256xf32, #tpu.memory_space<vmem>>, %arg8: memref<1x256xf32, #tpu.memory_space<vmem>>, %arg9: memref<1x256xf32, #tpu.memory_space<vmem>>) attributes {dimension_semantics = [#tpu.dimension_semantics<parallel>, #tpu.dimension_semantics<arbitrary>], iteration_bounds = array<i64: 2, 2>, scalar_prefetch = 0 : i64, scratch_operands = 3 : i64, tpu.core_type = #tpu.core_type<tc>, window_params = [{transform_indices = @transform_0, window_bounds = array<i64: 1, 4, 256>}, {transform_indices = @transform_1, window_bounds = array<i64: 1, 4, 256>}, {transform_indices = @transform_2, window_bounds = array<i64: 1, 16, 256>}, {transform_indices = @transform_3, window_bounds = array<i64: 1, 1, 256>}, {transform_indices = @transform_4, window_bounds = array<i64: 1, 1, 128>}]} {
    %c0_i32 = arith.constant 0 : i32
    %0 = arith.cmpi eq, %arg1, %c0_i32 : i32
    %1 = arith.extui %0 : i1 to i32
    %c0_i32_0 = arith.constant 0 : i32
    %2 = arith.cmpi ne, %1, %c0_i32_0 : i32
    scf.if %2 {
      %cst_35 = arith.constant 0.000000e+00 : f32
      %114 = vector.broadcast %cst_35 : f32 to vector<1x256xf32>
      %c0_36 = arith.constant 0 : index
      %c0_37 = arith.constant 0 : index
      %115 = vector.load %arg7[%c0_36, %c0_37] : memref<1x256xf32, #tpu.memory_space<vmem>>, vector<1x256xf32>
      tpu.vector_store %arg7[%c0_36, %c0_37], %114 {strides = array<i32>} : memref<1x256xf32, #tpu.memory_space<vmem>>, vector<1x256xf32>,
      %cst_38 = arith.constant 0.000000e+00 : f32
      %116 = vector.broadcast %cst_38 : f32 to vector<1x256xf32>
      %c0_39 = arith.constant 0 : index
      %c0_40 = arith.constant 0 : index
      %117 = vector.load %arg8[%c0_39, %c0_40] : memref<1x256xf32, #tpu.memory_space<vmem>>, vector<1x256xf32>
      tpu.vector_store %arg8[%c0_39, %c0_40], %116 {strides = array<i32>} : memref<1x256xf32, #tpu.memory_space<vmem>>, vector<1x256xf32>,
      %cst_41 = arith.constant 0.000000e+00 : f32
      %118 = vector.broadcast %cst_41 : f32 to vector<1x256xf32>
      %c0_42 = arith.constant 0 : index
      %c0_43 = arith.constant 0 : index
      %119 = vector.load %arg9[%c0_42, %c0_43] : memref<1x256xf32, #tpu.memory_space<vmem>>, vector<1x256xf32>
      tpu.vector_store %arg9[%c0_42, %c0_43], %118 {strides = array<i32>} : memref<1x256xf32, #tpu.memory_space<vmem>>, vector<1x256xf32>,
    } else {
    }
    %c0 = arith.constant 0 : index
    %c0_1 = arith.constant 0 : index
    %c0_2 = arith.constant 0 : index
    %3 = vector.load %arg2[%c0, %c0_1, %c0_2] : memref<1x4x256xf32, #tpu.memory_space<vmem>>, vector<1x4x256xf32>
    %4 = vector.shape_cast %3 : vector<1x4x256xf32> to vector<4x256xf32>
    %c0_3 = arith.constant 0 : index
    %c0_4 = arith.constant 0 : index
    %c0_5 = arith.constant 0 : index
    %5 = vector.load %arg3[%c0_3, %c0_4, %c0_5] : memref<1x4x256xf32, #tpu.memory_space<vmem>>, vector<1x4x256xf32>
    %6 = vector.shape_cast %5 : vector<1x4x256xf32> to vector<4x256xf32>
    %7 = vector.extract_strided_slice %4 {offsets = [0, 0], sizes = [1, 256], strides = [1, 1]} : vector<4x256xf32> to vector<1x256xf32>
    %8 = vector.extract_strided_slice %4 {offsets = [1, 0], sizes = [1, 256], strides = [1, 1]} : vector<4x256xf32> to vector<1x256xf32>
    %9 = vector.extract_strided_slice %4 {offsets = [2, 0], sizes = [1, 256], strides = [1, 1]} : vector<4x256xf32> to vector<1x256xf32>
    %10 = vector.extract_strided_slice %4 {offsets = [3, 0], sizes = [1, 256], strides = [1, 1]} : vector<4x256xf32> to vector<1x256xf32>
    %11 = vector.extract_strided_slice %6 {offsets = [0, 0], sizes = [1, 256], strides = [1, 1]} : vector<4x256xf32> to vector<1x256xf32>
    %12 = vector.extract_strided_slice %6 {offsets = [1, 0], sizes = [1, 256], strides = [1, 1]} : vector<4x256xf32> to vector<1x256xf32>
    %13 = vector.extract_strided_slice %6 {offsets = [2, 0], sizes = [1, 256], strides = [1, 1]} : vector<4x256xf32> to vector<1x256xf32>
    %14 = vector.extract_strided_slice %6 {offsets = [3, 0], sizes = [1, 256], strides = [1, 1]} : vector<4x256xf32> to vector<1x256xf32>
    %15 = arith.subf %9, %7 : vector<1x256xf32>
    %16 = arith.subf %10, %8 : vector<1x256xf32>
    %17 = arith.mulf %15, %16 : vector<1x256xf32>
    %18 = arith.subf %13, %11 : vector<1x256xf32>
    %19 = arith.subf %14, %12 : vector<1x256xf32>
    %20 = arith.mulf %18, %19 : vector<1x256xf32>
    %21 = arith.minimumf %9, %13 : vector<1x256xf32>
    %22 = arith.maximumf %7, %11 : vector<1x256xf32>
    %23 = arith.subf %21, %22 : vector<1x256xf32>
    %cst = arith.constant 0.000000e+00 : f32
    %24 = vector.broadcast %cst : f32 to vector<1x256xf32>
    %25 = arith.maximumf %23, %24 : vector<1x256xf32>
    %26 = arith.minimumf %10, %14 : vector<1x256xf32>
    %27 = arith.maximumf %8, %12 : vector<1x256xf32>
    %28 = arith.subf %26, %27 : vector<1x256xf32>
    %cst_6 = arith.constant 0.000000e+00 : f32
    %29 = vector.broadcast %cst_6 : f32 to vector<1x256xf32>
    %30 = arith.maximumf %28, %29 : vector<1x256xf32>
    %31 = arith.mulf %25, %30 : vector<1x256xf32>
    %32 = arith.addf %17, %20 : vector<1x256xf32>
    %33 = arith.subf %32, %31 : vector<1x256xf32>
    %cst_7 = arith.constant 1.000000e-07 : f32
    %34 = vector.broadcast %cst_7 : f32 to vector<1x256xf32>
    %35 = arith.maximumf %33, %34 : vector<1x256xf32>
    %36 = arith.divf %31, %35 : vector<1x256xf32>
    %37 = arith.maximumf %9, %13 : vector<1x256xf32>
    %38 = arith.minimumf %7, %11 : vector<1x256xf32>
    %39 = arith.subf %37, %38 : vector<1x256xf32>
    %40 = arith.maximumf %10, %14 : vector<1x256xf32>
    %41 = arith.minimumf %8, %12 : vector<1x256xf32>
    %42 = arith.subf %40, %41 : vector<1x256xf32>
    %43 = arith.mulf %39, %42 : vector<1x256xf32>
    %44 = arith.subf %43, %33 : vector<1x256xf32>
    %cst_8 = arith.constant 1.000000e-07 : f32
    %45 = vector.broadcast %cst_8 : f32 to vector<1x256xf32>
    %46 = arith.maximumf %43, %45 : vector<1x256xf32>
    %47 = arith.divf %44, %46 : vector<1x256xf32>
    %48 = arith.subf %36, %47 : vector<1x256xf32>
    %cst_9 = arith.constant 1.000000e+00 : f32
    %49 = vector.broadcast %cst_9 : f32 to vector<1x256xf32>
    %50 = arith.subf %49, %48 : vector<1x256xf32>
    %c256_i32 = arith.constant 256 : i32
    %51 = arith.muli %arg1, %c256_i32 : i32
    %52 = tpu.iota {dimensions = array<i32: 1>} : vector<1x256xi32>
    %53 = vector.broadcast %51 : i32 to vector<1x256xi32>
    %54 = arith.addi %52, %53 : vector<1x256xi32>
    %c400_i32 = arith.constant 400 : i32
    %55 = vector.broadcast %c400_i32 : i32 to vector<1x256xi32>
    %56 = arith.cmpi slt, %54, %55 : vector<1x256xi32>
    %57 = arith.extui %56 : vector<1x256xi1> to vector<1x256xi32>
    %58 = arith.sitofp %57 : vector<1x256xi32> to vector<1x256xf32>
    %59 = arith.addf %11, %12 : vector<1x256xf32>
    %60 = arith.addf %59, %13 : vector<1x256xf32>
    %61 = arith.addf %60, %14 : vector<1x256xf32>
    %cst_10 = arith.constant 0.000000e+00 : f32
    %62 = vector.broadcast %cst_10 : f32 to vector<1x256xf32>
    %63 = arith.cmpf one, %61, %62 : vector<1x256xf32>
    %64 = arith.extui %63 : vector<1x256xi1> to vector<1x256xi32>
    %65 = arith.sitofp %64 : vector<1x256xi32> to vector<1x256xf32>
    %66 = arith.mulf %65, %58 : vector<1x256xf32>
    %c0_11 = arith.constant 0 : index
    %c0_12 = arith.constant 0 : index
    %67 = vector.load %arg7[%c0_11, %c0_12] : memref<1x256xf32, #tpu.memory_space<vmem>>, vector<1x256xf32>
    %68 = arith.mulf %66, %50 : vector<1x256xf32>
    %69 = arith.addf %67, %68 : vector<1x256xf32>
    %c0_13 = arith.constant 0 : index
    %c0_14 = arith.constant 0 : index
    %70 = vector.load %arg7[%c0_13, %c0_14] : memref<1x256xf32, #tpu.memory_space<vmem>>, vector<1x256xf32>
    tpu.vector_store %arg7[%c0_13, %c0_14], %69 {strides = array<i32>} : memref<1x256xf32, #tpu.memory_space<vmem>>, vector<1x256xf32>,
    %c0_15 = arith.constant 0 : index
    %c0_16 = arith.constant 0 : index
    %71 = vector.load %arg8[%c0_15, %c0_16] : memref<1x256xf32, #tpu.memory_space<vmem>>, vector<1x256xf32>
    %72 = arith.addf %71, %66 : vector<1x256xf32>
    %c0_17 = arith.constant 0 : index
    %c0_18 = arith.constant 0 : index
    %73 = vector.load %arg8[%c0_17, %c0_18] : memref<1x256xf32, #tpu.memory_space<vmem>>, vector<1x256xf32>
    tpu.vector_store %arg8[%c0_17, %c0_18], %72 {strides = array<i32>} : memref<1x256xf32, #tpu.memory_space<vmem>>, vector<1x256xf32>,
    %c0_19 = arith.constant 0 : index
    %c0_20 = arith.constant 0 : index
    %c0_21 = arith.constant 0 : index
    %74 = vector.load %arg4[%c0_19, %c0_20, %c0_21] : memref<1x16x256xbf16, #tpu.memory_space<vmem>>, vector<1x16x256xbf16>
    %75 = vector.shape_cast %74 : vector<1x16x256xbf16> to vector<16x256xbf16>
    %76 = arith.extf %75 : vector<16x256xbf16> to vector<16x256xf32>
    %c0_22 = arith.constant 0 : index
    %c0_23 = arith.constant 0 : index
    %c0_24 = arith.constant 0 : index
    %77 = vector.load %arg5[%c0_22, %c0_23, %c0_24] : memref<1x1x256xi32, #tpu.memory_space<vmem>>, vector<1x1x256xi32>
    %78 = vector.shape_cast %77 : vector<1x1x256xi32> to vector<1x256xi32>
    %79 = tpu.iota {dimensions = array<i32: 0>} : vector<16x256xi32>
    %80 = vector.broadcast %78 : vector<1x256xi32> to vector<16x256xi32>
    %81 = arith.cmpi eq, %79, %80 : vector<16x256xi32>
    %82 = arith.extui %81 : vector<16x256xi1> to vector<16x256xi32>
    %83 = arith.sitofp %82 : vector<16x256xi32> to vector<16x256xf32>
    %84 = vector.broadcast %36 : vector<1x256xf32> to vector<16x256xf32>
    %85 = arith.mulf %83, %84 : vector<16x256xf32>
    %86 = arith.negf %76 : vector<16x256xf32>
    %87 = math.exp %86 : vector<16x256xf32>
    %cst_25 = arith.constant 1.000000e+00 : f32
    %88 = vector.broadcast %cst_25 : f32 to vector<16x256xf32>
    %89 = arith.addf %88, %87 : vector<16x256xf32>
    %90 = arith.divf %88, %89 : vector<16x256xf32>
    %cst_26 = arith.constant 0.000000e+00 : f32
    %91 = vector.broadcast %cst_26 : f32 to vector<16x256xf32>
    %92 = arith.cmpf oge, %76, %91 : vector<16x256xf32>
    %cst_27 = arith.constant 1.000000e+00 : f32
    %93 = vector.broadcast %cst_27 : f32 to vector<16x256xf32>
    %94 = arith.subf %93, %90 : vector<16x256xf32>
    %95 = arith.select %92, %90, %94 : vector<16x256xi1>, vector<16x256xf32>
    %cst_28 = arith.constant 0.000000e+00 : f32
    %96 = vector.broadcast %cst_28 : f32 to vector<16x256xf32>
    %97 = arith.maximumf %76, %96 : vector<16x256xf32>
    %98 = arith.mulf %76, %85 : vector<16x256xf32>
    %99 = arith.subf %97, %98 : vector<16x256xf32>
    %100 = math.log %95 : vector<16x256xf32>
    %101 = arith.subf %99, %100 : vector<16x256xf32>
    %102 = arith.subf %85, %90 : vector<16x256xf32>
    %103 = arith.mulf %101, %102 : vector<16x256xf32>
    %104 = arith.mulf %103, %102 : vector<16x256xf32>
    %c0_29 = arith.constant 0 : index
    %c0_30 = arith.constant 0 : index
    %105 = vector.load %arg9[%c0_29, %c0_30] : memref<1x256xf32, #tpu.memory_space<vmem>>, vector<1x256xf32>
    %cst_31 = arith.constant dense<0.000000e+00> : vector<256xf32>
    %106 = vector.multi_reduction <add>, %104, %cst_31 [0] : vector<16x256xf32> to vector<256xf32>
    %107 = vector.shape_cast %106 : vector<256xf32> to vector<1x256xf32>
    %108 = arith.mulf %58, %107 : vector<1x256xf32>
    %109 = arith.addf %105, %108 : vector<1x256xf32>
    %c0_32 = arith.constant 0 : index
    %c0_33 = arith.constant 0 : index
    %110 = vector.load %arg9[%c0_32, %c0_33] : memref<1x256xf32, #tpu.memory_space<vmem>>, vector<1x256xf32>
    tpu.vector_store %arg9[%c0_32, %c0_33], %109 {strides = array<i32>} : memref<1x256xf32, #tpu.memory_space<vmem>>, vector<1x256xf32>,
    %c1_i32 = arith.constant 1 : i32
    %111 = arith.cmpi eq, %arg1, %c1_i32 : i32
    %112 = arith.extui %111 : i1 to i32
    %c0_i32_34 = arith.constant 0 : i32
    %113 = arith.cmpi ne, %112, %c0_i32_34 : i32
    scf.if %113 {
      %c0_35 = arith.constant 0 : index
      %c0_36 = arith.constant 0 : index
      %114 = vector.load %arg7[%c0_35, %c0_36] : memref<1x256xf32, #tpu.memory_space<vmem>>, vector<1x256xf32>
      %cst_37 = arith.constant dense<0.000000e+00> : vector<1xf32>
      %115 = vector.multi_reduction <add>, %114, %cst_37 [1] : vector<1x256xf32> to vector<1xf32>
      %116 = vector.shape_cast %115 : vector<1xf32> to vector<1x1xf32>
      %c0_38 = arith.constant 0 : index
      %c0_39 = arith.constant 0 : index
      %117 = vector.load %arg8[%c0_38, %c0_39] : memref<1x256xf32, #tpu.memory_space<vmem>>, vector<1x256xf32>
      %cst_40 = arith.constant dense<0.000000e+00> : vector<1xf32>
      %118 = vector.multi_reduction <add>, %117, %cst_40 [1] : vector<1x256xf32> to vector<1xf32>
      %119 = vector.shape_cast %118 : vector<1xf32> to vector<1x1xf32>
      %cst_41 = arith.constant 1.000000e+00 : f32
      %120 = vector.broadcast %cst_41 : f32 to vector<1x1xf32>
      %121 = arith.maximumf %119, %120 : vector<1x1xf32>
      %c0_42 = arith.constant 0 : index
      %c0_43 = arith.constant 0 : index
      %122 = vector.load %arg9[%c0_42, %c0_43] : memref<1x256xf32, #tpu.memory_space<vmem>>, vector<1x256xf32>
      %cst_44 = arith.constant dense<0.000000e+00> : vector<1xf32>
      %123 = vector.multi_reduction <add>, %122, %cst_44 [1] : vector<1x256xf32> to vector<1xf32>
      %124 = vector.shape_cast %123 : vector<1xf32> to vector<1x1xf32>
      %cst_45 = arith.constant 2.000000e+00 : f32
      %125 = vector.broadcast %cst_45 : f32 to vector<1x1xf32>
      %126 = arith.mulf %125, %116 : vector<1x1xf32>
      %127 = arith.addf %126, %124 : vector<1x1xf32>
      %128 = arith.divf %127, %121 : vector<1x1xf32>
      %129 = vector.shape_cast %128 : vector<1x1xf32> to vector<1x1x1xf32>
      %130 = vector.shape_cast %129 : vector<1x1x1xf32> to vector<1x1x1xf32>
      %131 = vector.broadcast %130 : vector<1x1x1xf32> to vector<1x1x128xf32>
      %c0_46 = arith.constant 0 : index
      %c0_47 = arith.constant 0 : index
      %c0_48 = arith.constant 0 : index
      %132 = vector.load %arg6[%c0_46, %c0_47, %c0_48] : memref<1x1x128xf32, #tpu.memory_space<vmem>>, vector<1x1x128xf32>
      tpu.vector_store %arg6[%c0_46, %c0_47, %c0_48], %131 {strides = array<i32>} : memref<1x1x128xf32, #tpu.memory_space<vmem>>, vector<1x1x128xf32>,
    } else {
    }
    return
  }
  func.func @transform_0(%arg0: i32, %arg1: i32) -> (i32, i32, i32) {
    %c0_i32 = arith.constant 0 : i32
    %c0_i32_0 = arith.constant 0 : i32
    return %arg0, %c0_i32, %arg1 : i32, i32, i32
  }
  func.func @transform_1(%arg0: i32, %arg1: i32) -> (i32, i32, i32) {
    %c0_i32 = arith.constant 0 : i32
    %c0_i32_0 = arith.constant 0 : i32
    return %arg0, %c0_i32, %arg1 : i32, i32, i32
  }
  func.func @transform_2(%arg0: i32, %arg1: i32) -> (i32, i32, i32) {
    %c0_i32 = arith.constant 0 : i32
    %c0_i32_0 = arith.constant 0 : i32
    return %arg0, %c0_i32, %arg1 : i32, i32, i32
  }
  func.func @transform_3(%arg0: i32, %arg1: i32) -> (i32, i32, i32) {
    %c0_i32 = arith.constant 0 : i32
    %c0_i32_0 = arith.constant 0 : i32
    return %arg0, %c0_i32, %arg1 : i32, i32, i32
  }
  func.func @transform_4(%arg0: i32, %arg1: i32) -> (i32, i32, i32) {
    %c0_i32 = arith.constant 0 : i32
    %c0_i32_0 = arith.constant 0 : i32
    %c0_i32_1 = arith.constant 0 : i32
    return %arg0, %c0_i32, %c0_i32_0 : i32, i32, i32
  }
}

</mosaic_0001>

<llo_original>
// kernel: tpu_custom_call.1
$region0: #{tpu_custom_call.1}
  #allocation0 [shape = 'u32[]', space=smem, size = 0x4, offset = 0x4, fixed_abs, tag = 'smem constant byte address 0x4 - core index']
  #allocation1 [shape = 'u32[144,128]{1,0:T(1,128)}', space=vmem, size = 0x12000, scoped, tag = 'internal scratch']
  #allocation2 [shape = 'f32[1,256]{1,0:T(1,128)}', space=vmem, size = 0x400, scoped, tag = 'scratch operand']
  #allocation3 [shape = 'f32[1,256]{1,0:T(1,128)}', space=vmem, size = 0x400, scoped, tag = 'scratch operand']
  #allocation4 [shape = 'f32[1,256]{1,0:T(1,128)}', space=vmem, size = 0x400, scoped, tag = 'scratch operand']
  %s0 = inlined_call_operand.hbm [shape: f32[2,4,512], index: 0, kind: input, shape index: {}]
  %s1 = inlined_call_operand.hbm [shape: f32[2,4,512], index: 1, kind: input, shape index: {}]
  %s2 = inlined_call_operand.hbm [shape: bf16[2,16,512], index: 2, kind: input, shape index: {}]
  %s3 = inlined_call_operand.vmem [shape: s32[2,1,512], index: 3, kind: input, shape index: {}]
  %s4 = inlined_call_operand.hbm [shape: f32[2,1,128], index: 4, kind: output, shape index: {}]
  %s5 = sld [smem:[#allocation0]]
  $region69: #{tpu_custom_call.1} parent=0
    _
  %s7 = ssub.s32 1, %s5
  %s8 = scalar_select 0, %s7, %s5
  $region1: #{tpu_custom_call.1} parent=0
    #allocation5 [shape = 'u8[8192]{0}', space=vmem, size = 0x2000, scoped, tag = 'input window, operand 0']
    #allocation6 [shape = 's32[2]{0}', space=sflag, size = 0x8, scoped, tag = 'scoped memory for tpu_custom_call.1']
    #allocation7 [shape = 's32[2]{0}', space=sflag, size = 0x8, scoped, tag = 'scoped memory for tpu_custom_call.1']
    #allocation8 [shape = 'u8[8192]{0}', space=vmem, size = 0x2000, scoped, tag = 'input window, operand 1']
    #allocation9 [shape = 's32[2]{0}', space=sflag, size = 0x8, scoped, tag = 'scoped memory for tpu_custom_call.1']
    #allocation10 [shape = 'u8[16384]{0}', space=vmem, size = 0x4000, scoped, tag = 'input window, operand 2']
    #allocation11 [shape = 'u8[1024]{0}', space=vmem, size = 0x400, scoped, tag = 'output window, operand 0']
    %9 = vsyncpa [#allocation6], 0
    %s10 = scalar_lea.sflag [#allocation6], 1
    %11 = vsyncpa %s10, 0
    %12 = vsyncpa [#allocation9], 0
    %s13 = scalar_lea.sflag [#allocation9], 1
    %14 = vsyncpa %s13, 0
    %15 = vsyncpa [#allocation7], 0
    %s16 = scalar_lea.sflag [#allocation7], 1
    %17 = vsyncpa %s16, 0
    loop: start=0, step=1, limit=6
    $region2: #{tpu_custom_call.1} parent=1 // loop_pre_header
      _
    $region3: #{tpu_custom_call.1} parent=1 // loop_header
      %s19 = sphi 0, %s23
      %p20 = scmp.ge.s32.totalorder %s19, 6
      %s26 = sphi 0, %s38
      %s27 = sphi 0, %s34
      %s28 = sphi 0, %s26
      %s29 = sphi 0, %s27
      %s30 = sphi 0, %s28
      %s31 = sphi 0, %s29
      %s43 = sphi 0, %s45
      %s46 = sphi 0, %s43
      %s47 = sphi 0, %s46
      %s63 = sphi 0, %s47
      %s71 = sphi 0, %s73
      %s74 = sphi 0, %s71
      %s75 = sphi 0, %s74
      %s91 = sphi 0, %s75
      %s99 = sphi 0, %s101
      %s102 = sphi 0, %s99
      %s103 = sphi 0, %s102
      %s119 = sphi 0, %s103
      %s127 = sphi 0, %s129
      %s130 = sphi 0, %s127
      %s131 = sphi 0, %s130
      %s147 = sphi 0, %s131
      %s153 = sphi 0, %s155
      %s156 = sphi 0, %s153
      %s157 = sphi 0, %s156
      %s173 = sphi 0, %s157
    $region4: #{tpu_custom_call.1} parent=1 // loop_header_branch
      %22 = sbr.rel (%p20) target = $region8
    $region5: #{tpu_custom_call.1} parent=1 // loop_body
      %s24 = ssub.s32 %s19, 1
      %s25 = ssub.s32 %s19, 2
      %s32 = sadd.s32 1, %s27
      %p33 = scmp.ge.s32.totalorder %s32, 2
      %s34 = scalar_select %p33, 0, %s32
      %s35 = sadd.s32 1, %s26
      %s36 = scalar_select %p33, %s35, %s26
      %p37 = scmp.ge.s32.totalorder %s36, 2
      %s38 = scalar_select %p37, 0, %s36
      %s39 = ssub.s32 %s26, %s38
      %s40 = ssub.s32 %s27, %s34
      %s41 = sor.u32 %s39, %s40
      %p42 = scmp.eq.s32.totalorder %s41, 0
      %s44 = sadd.s32 %s43, 1
      %s45 = scalar_select %p42, %s43, %s44
      %p48 = pneg %p42
      %p49 = scmp.eq.s32.totalorder %s19, 3
      %p50 = por %p48, %p49
      %p51 = scmp.ne.s32.totalorder %s43, %s46
      %p52 = scmp.eq.s32.totalorder %s19, 0
      %p53 = por %p51, %p52
      %p54 = scmp.ne.s32.totalorder %s43, %s46
      %p55 = scmp.eq.s32.totalorder %s24, 3
      %p56 = por %p54, %p55
      %p57 = scmp.ne.s32.totalorder %s46, %s47
      %p58 = scmp.eq.s32.totalorder %s24, 0
      %p59 = por %p57, %p58
      %p60 = scmp.ne.s32.totalorder %s46, %s47
      %p61 = scmp.eq.s32.totalorder %s25, 3
      %p62 = por %p60, %p61
      %p64 = scmp.ne.s32.totalorder %s47, %s63
      %p65 = scmp.eq.s32.totalorder %s25, 0
      %p66 = por %p64, %p65
      %s67 = ssub.s32 %s26, %s38
      %s68 = ssub.s32 %s27, %s34
      %s69 = sor.u32 %s67, %s68
      %p70 = scmp.eq.s32.totalorder %s69, 0
      %s72 = sadd.s32 %s71, 1
      %s73 = scalar_select %p70, %s71, %s72
      %p76 = pneg %p70
      %p77 = scmp.eq.s32.totalorder %s19, 3
      %p78 = por %p76, %p77
      %p79 = scmp.ne.s32.totalorder %s71, %s74
      %p80 = scmp.eq.s32.totalorder %s19, 0
      %p81 = por %p79, %p80
      %p82 = scmp.ne.s32.totalorder %s71, %s74
      %p83 = scmp.eq.s32.totalorder %s24, 3
      %p84 = por %p82, %p83
      %p85 = scmp.ne.s32.totalorder %s74, %s75
      %p86 = scmp.eq.s32.totalorder %s24, 0
      %p87 = por %p85, %p86
      %p88 = scmp.ne.s32.totalorder %s74, %s75
      %p89 = scmp.eq.s32.totalorder %s25, 3
      %p90 = por %p88, %p89
      %p92 = scmp.ne.s32.totalorder %s75, %s91
      %p93 = scmp.eq.s32.totalorder %s25, 0
      %p94 = por %p92, %p93
      %s95 = ssub.s32 %s26, %s38
      %s96 = ssub.s32 %s27, %s34
      %s97 = sor.u32 %s95, %s96
      %p98 = scmp.eq.s32.totalorder %s97, 0
      %s100 = sadd.s32 %s99, 1
      %s101 = scalar_select %p98, %s99, %s100
      %p104 = pneg %p98
      %p105 = scmp.eq.s32.totalorder %s19, 3
      %p106 = por %p104, %p105
      %p107 = scmp.ne.s32.totalorder %s99, %s102
      %p108 = scmp.eq.s32.totalorder %s19, 0
      %p109 = por %p107, %p108
      %p110 = scmp.ne.s32.totalorder %s99, %s102
      %p111 = scmp.eq.s32.totalorder %s24, 3
      %p112 = por %p110, %p111
      %p113 = scmp.ne.s32.totalorder %s102, %s103
      %p114 = scmp.eq.s32.totalorder %s24, 0
      %p115 = por %p113, %p114
      %p116 = scmp.ne.s32.totalorder %s102, %s103
      %p117 = scmp.eq.s32.totalorder %s25, 3
      %p118 = por %p116, %p117
      %p120 = scmp.ne.s32.totalorder %s103, %s119
      %p121 = scmp.eq.s32.totalorder %s25, 0
      %p122 = por %p120, %p121
      %s123 = ssub.s32 %s26, %s38
      %s124 = ssub.s32 %s27, %s34
      %s125 = sor.u32 %s123, %s124
      %p126 = scmp.eq.s32.totalorder %s125, 0
      %s128 = sadd.s32 %s127, 1
      %s129 = scalar_select %p126, %s127, %s128
      %p132 = pneg %p126
      %p133 = scmp.eq.s32.totalorder %s19, 3
      %p134 = por %p132, %p133
      %p135 = scmp.ne.s32.totalorder %s127, %s130
      %p136 = scmp.eq.s32.totalorder %s19, 0
      %p137 = por %p135, %p136
      %p138 = scmp.ne.s32.totalorder %s127, %s130
      %p139 = scmp.eq.s32.totalorder %s24, 3
      %p140 = por %p138, %p139
      %p141 = scmp.ne.s32.totalorder %s130, %s131
      %p142 = scmp.eq.s32.totalorder %s24, 0
      %p143 = por %p141, %p142
      %p144 = scmp.ne.s32.totalorder %s130, %s131
      %p145 = scmp.eq.s32.totalorder %s25, 3
      %p146 = por %p144, %p145
      %p148 = scmp.ne.s32.totalorder %s131, %s147
      %p149 = scmp.eq.s32.totalorder %s25, 0
      %p150 = por %p148, %p149
      %s151 = ssub.s32 %s26, %s38
      %p152 = scmp.eq.s32.totalorder %s151, 0
      %s154 = sadd.s32 %s153, 1
      %s155 = scalar_select %p152, %s153, %s154
      %p158 = pneg %p152
      %p159 = scmp.eq.s32.totalorder %s19, 3
      %p160 = por %p158, %p159
      %p161 = scmp.ne.s32.totalorder %s153, %s156
      %p162 = scmp.eq.s32.totalorder %s19, 0
      %p163 = por %p161, %p162
      %p164 = scmp.ne.s32.totalorder %s153, %s156
      %p165 = scmp.eq.s32.totalorder %s24, 3
      %p166 = por %p164, %p165
      %p167 = scmp.ne.s32.totalorder %s156, %s157
      %p168 = scmp.eq.s32.totalorder %s24, 0
      %p169 = por %p167, %p168
      %p170 = scmp.ne.s32.totalorder %s156, %s157
      %p171 = scmp.eq.s32.totalorder %s25, 3
      %p172 = por %p170, %p171
      %p174 = scmp.ne.s32.totalorder %s157, %s173
      %p175 = scmp.eq.s32.totalorder %s25, 0
      %p176 = por %p174, %p175
      %p177 = scmp.le.s32.totalorder 1, %s19
      %p178 = scmp.lt.s32.totalorder %s19, 5
      %p179 = pnand %p177, %p178
      %p180 = pneg %p179
      // Predicated region
      $region9: #{tpu_custom_call.1} parent=5 // pred_check
        _
      $region10: #{tpu_custom_call.1} parent=5 // pred_check_branch
        %182 = sbr.rel (%p179) target = $region12
      $region11: #{tpu_custom_call.1} parent=5 // pred_region
        %s183 = ssub.s32 %s19, 1
      $region12: #{tpu_custom_call.1} parent=5 // pred_fallthru
        _
      %p184 = scmp.lt.s32.totalorder %s19, 4
      // Predicated region
      $region13: #{tpu_custom_call.1} parent=5 // pred_check
        %p185 = pneg %p184
      $region14: #{tpu_custom_call.1} parent=5 // pred_check_branch
        %187 = sbr.rel (%p185) target = $region16
      $region15: #{tpu_custom_call.1} parent=5 // pred_region
        // Predicated region
        $region17: #{tpu_custom_call.1} parent=15 // pred_check
          %p188 = pneg %p53
        $region18: #{tpu_custom_call.1} parent=15 // pred_check_branch
          %190 = sbr.rel (%p188) target = $region20
        $region19: #{tpu_custom_call.1} parent=15 // pred_region
          %s191 = sand.u32 %s43, 1
          %s192 = scalar_lea.sflag [#allocation6], %s191
          %s193 = sand.u32 %s43, 1
          %s194 = smul.addr %s193, 8
          %s195 = scalar_lea.vmem [#allocation5], %s194
          %s196 = smul.u32 2, %s27
          %s198 = ssub.s32 128, 128
          %199 = vsyncadd %s192, %s198
          %s200 = smul.addr %s26, 4
          %s201 = sadd.s32 %s196, %s200
          %s202 = smul.addr %s201, 64
          %s203 = scalar_lea.hbm %s0, %s202
          %s205 = sshll.u32 %s195, 4
          %s206 = int_to_ptr.vmem [resolvable:$true] %s205
          %208 = dma.hbm_to_vmem [thread:$0]  %s203, 128, %s206, %s192
        $region20: #{tpu_custom_call.1} parent=15 // pred_fallthru
          _
        // Predicated region
        $region21: #{tpu_custom_call.1} parent=15 // pred_check
          %p209 = pneg %p81
        $region22: #{tpu_custom_call.1} parent=15 // pred_check_branch
          %211 = sbr.rel (%p209) target = $region24
        $region23: #{tpu_custom_call.1} parent=15 // pred_region
          %s212 = sand.u32 %s19, 1
          %s213 = scalar_lea.sflag [#allocation9], %s212
          %s214 = sand.u32 %s71, 1
          %s215 = smul.addr %s214, 8
          %s216 = scalar_lea.vmem [#allocation8], %s215
          %s217 = smul.u32 2, %s27
          %s219 = ssub.s32 128, 128
          %220 = vsyncadd %s213, %s219
          %s221 = smul.addr %s26, 4
          %s222 = sadd.s32 %s217, %s221
          %s223 = smul.addr %s222, 64
          %s224 = scalar_lea.hbm %s1, %s223
          %s226 = sshll.u32 %s216, 4
          %s227 = int_to_ptr.vmem [resolvable:$true] %s226
          %229 = dma.hbm_to_vmem [thread:$0]  %s224, 128, %s227, %s213
        $region24: #{tpu_custom_call.1} parent=15 // pred_fallthru
          _
        // Predicated region
        $region25: #{tpu_custom_call.1} parent=15 // pred_check
          %p230 = pneg %p109
        $region26: #{tpu_custom_call.1} parent=15 // pred_check_branch
          %232 = sbr.rel (%p230) target = $region28
        $region27: #{tpu_custom_call.1} parent=15 // pred_region
          %s233 = sand.u32 %s19, 1
          %s234 = scalar_lea.sflag [#allocation9], %s233
          %s235 = sand.u32 %s99, 1
          %s236 = smul.addr %s235, 16
          %s237 = scalar_lea.vmem [#allocation10], %s236
          %s238 = smul.u32 2, %s27
          %s240 = ssub.s32 256, 256
          %241 = vsyncadd %s234, %s240
          %s242 = smul.addr %s26, 8
          %s243 = sadd.s32 %s238, %s242
          %s244 = smul.addr %s243, 64
          %s245 = scalar_lea.hbm %s2, %s244
          %s246 = sshll.u32 %s237, 4
          %s247 = int_to_ptr.vmem [resolvable:$true] %s246
          %252 = dma.hbm_to_vmem [thread:$0]  %s245, 256, %s247, %s234, 256, 128, 8
        $region28: #{tpu_custom_call.1} parent=15 // pred_fallthru
          _
        // Predicated region
        $region29: #{tpu_custom_call.1} parent=15 // pred_check
          %p253 = pneg %p137
        $region30: #{tpu_custom_call.1} parent=15 // pred_check_branch
          %255 = sbr.rel (%p253) target = $region32
        $region31: #{tpu_custom_call.1} parent=15 // pred_region
          %s256 = smul.u32 2, %s27
          %p257 = scmp.lt.s32.totalorder %s26, 1
          %s258 = scalar_select %p257, %s26, 1
          %p259 = scmp.lt.s32.totalorder %s256, 3
          %s260 = scalar_select %p259, %s256, 3
          %s261 = smul.addr %s258, 4
          %s262 = sadd.s32 %s260, %s261
          %s263 = scalar_lea.vmem %s3, %s262
          %s264 = smul.u32 2, %s27
        $region32: #{tpu_custom_call.1} parent=15 // pred_fallthru
          _
      $region16: #{tpu_custom_call.1} parent=5 // pred_fallthru
        _
      %p265 = scmp.le.s32.totalorder 1, %s19
      %p266 = scmp.lt.s32.totalorder %s19, 5
      %p267 = pnand %p265, %p266
      %p268 = pneg %p267
      // Predicated region
      $region33: #{tpu_custom_call.1} parent=5 // pred_check
        _
      $region34: #{tpu_custom_call.1} parent=5 // pred_check_branch
        %270 = sbr.rel (%p267) target = $region36
      $region35: #{tpu_custom_call.1} parent=5 // pred_region
        %s271 = ssub.s32 %s19, 1
        %s272 = sand.u32 %s46, 1
        %s273 = scalar_lea.sflag [#allocation6], %s272
        %s274 = sand.u32 %s46, 1
        %s275 = smul.addr %s274, 8
        %s276 = scalar_lea.vmem [#allocation5], %s275
        // Predicated region
        $region37: #{tpu_custom_call.1} parent=35 // pred_check
          %p277 = pneg %p59
        $region38: #{tpu_custom_call.1} parent=35 // pred_check_branch
          %279 = sbr.rel (%p277) target = $region40
        $region39: #{tpu_custom_call.1} parent=35 // pred_region
          %280 = dma.done %s273, 128
        $region40: #{tpu_custom_call.1} parent=35 // pred_fallthru
          _
        %s281 = sand.u32 %s24, 1
        %s282 = scalar_lea.sflag [#allocation9], %s281
        %s283 = sand.u32 %s74, 1
        %s284 = smul.addr %s283, 8
        %s285 = scalar_lea.vmem [#allocation8], %s284
        // Predicated region
        $region41: #{tpu_custom_call.1} parent=35 // pred_check
          %p286 = pneg %p87
        $region42: #{tpu_custom_call.1} parent=35 // pred_check_branch
          %288 = sbr.rel (%p286) target = $region44
        $region43: #{tpu_custom_call.1} parent=35 // pred_region
          %289 = dma.done %s282, 128
        $region44: #{tpu_custom_call.1} parent=35 // pred_fallthru
          _
        %s290 = sand.u32 %s24, 1
        %s291 = scalar_lea.sflag [#allocation9], %s290
        %s292 = sand.u32 %s102, 1
        %s293 = smul.addr %s292, 16
        %s294 = scalar_lea.vmem [#allocation10], %s293
        // Predicated region
        $region45: #{tpu_custom_call.1} parent=35 // pred_check
          %p295 = pneg %p115
        $region46: #{tpu_custom_call.1} parent=35 // pred_check_branch
          %297 = sbr.rel (%p295) target = $region48
        $region47: #{tpu_custom_call.1} parent=35 // pred_region
          %298 = dma.done %s291, 256
        $region48: #{tpu_custom_call.1} parent=35 // pred_fallthru
          _
        %s299 = sand.u32 %s46, 1
        %s300 = scalar_lea.sflag [#allocation6], %s299
        %s301 = sand.u32 %s46, 1
        %s302 = smul.addr %s301, 8
        %s303 = scalar_lea.vmem [#allocation5], %s302
        %p304 = pneg %p59
        %p305 = pneg %p56
        %s306 = sand.u32 %s24, 1
        %s307 = scalar_lea.sflag [#allocation9], %s306
        %s308 = sand.u32 %s74, 1
        %s309 = smul.addr %s308, 8
        %s310 = scalar_lea.vmem [#allocation8], %s309
        %p311 = pneg %p87
        %p312 = pneg %p84
        %s313 = sand.u32 %s24, 1
        %s314 = scalar_lea.sflag [#allocation9], %s313
        %s315 = sand.u32 %s102, 1
        %s316 = smul.addr %s315, 16
        %s317 = scalar_lea.vmem [#allocation10], %s316
        %p318 = pneg %p115
        %p319 = pneg %p112
        %s320 = smul.u32 2, %s29
        %p321 = scmp.lt.s32.totalorder %s28, 1
        %s322 = scalar_select %p321, %s28, 1
        %p323 = scmp.lt.s32.totalorder %s320, 3
        %s324 = scalar_select %p323, %s320, 3
        %s325 = smul.addr %s322, 4
        %s326 = sadd.s32 %s324, %s325
        %s327 = scalar_lea.vmem %s3, %s326
        %p328 = pneg %p143
        %p329 = pneg %p140
        %p330 = pneg %p169
        %p331 = pneg %p166
        %s332 = sand.u32 %s156, 1
        %s333 = scalar_lea.sflag [#allocation7], %s332
        %s334 = sand.u32 %s156, 1
        %s335 = scalar_lea.vmem [#allocation11], %s334
        %s336 = smul.u32 2, %s29
        %s337 = smul.u32 2, %s29
        %s338 = smul.u32 2, %s29
        %s339 = smul.u32 2, %s29
        %p340 = scmp.lt.s32.totalorder %s28, 1
        %s341 = scalar_select %p340, %s28, 1
        %p342 = scmp.lt.s32.totalorder %s339, 3
        %s343 = scalar_select %p342, %s339, 3
        %s344 = smul.addr %s341, 4
        %s345 = sadd.s32 %s343, %s344
        %s346 = scalar_lea.vmem %s3, %s345
        %s347 = smul.u32 2, %s29
        %p348 = scmp.eq.s32.totalorder %s29, 0
        // Predicated region
        $region49: #{tpu_custom_call.1} parent=35 // pred_check
          %p349 = pneg %p348
        $region50: #{tpu_custom_call.1} parent=35 // pred_check_branch
          %351 = sbr.rel (%p349) target = $region52
        $region51: #{tpu_custom_call.1} parent=35 // pred_region
          %v352 = vlaneseq
          %vm353 = vcmp.ge.s32.totalorder %v352, 0
          %vm354 = vcmp.lt.s32.totalorder %v352, 256
          %vm355 = vmand %vm353, %vm354
          %356 = vst.msk [vmem:[#allocation2] sm:$0x3] %vm355, 0.0
          %357 = vst.msk [vmem:[#allocation3] sm:$0x3] %vm355, 0.0
          %358 = vst.msk [vmem:[#allocation4] sm:$0x3] %vm355, 0.0
        $region52: #{tpu_custom_call.1} parent=35 // pred_fallthru
          _
        %v359 = vld [vmem:[%s276] sm:$0xff]
        %v360 = vld [vmem:[%s285] sm:$0xff]
        %v362 = vrot.slane %v359, 6
        %v364 = vsub.f32 %v359, %v362
        %v366 = vrot.slane %v364, 5
        %v367 = vrot.slane %v366, 4
        %v369 = vmul.f32 %v364, %v367
        %v371 = vrot.slane %v360, 6
        %v373 = vsub.f32 %v360, %v371
        %v375 = vrot.slane %v373, 5
        %v376 = vrot.slane %v375, 4
        %v378 = vmul.f32 %v373, %v376
        %v379 = vmin.f32 %v359, %v360
        %v380 = vmax.f32 %v359, %v360
        %v382 = vrot.slane %v380, 6
        %v384 = vsub.f32 %v379, %v382
        %v385 = vmax.f32 %v384, 0.0
        %v387 = vrot.slane %v385, 5
        %v388 = vrot.slane %v387, 4
        %v390 = vmul.f32 %v385, %v388
        %v391 = vadd.f32 %v369, %v378
        %v392 = vsub.f32 %v391, %v390
        %v393 = vmax.f32 %v392, 1e-07
        %v394 = vrcp.pop %v393
        %v395 = vmul.f32 %v390, %v394
        %v397 = vrot.slane %v379, 6
        %v399 = vsub.f32 %v380, %v397
        %v401 = vrot.slane %v399, 5
        %v402 = vrot.slane %v401, 4
        %v404 = vmul.f32 %v399, %v402
        %v405 = vsub.f32 %v404, %v392
        %v406 = vmax.f32 %v404, 1e-07
        %v407 = vrcp.pop %v406
        %v408 = vmul.f32 %v405, %v407
        %v409 = vsub.f32 %v395, %v408
        %v410 = vsub.f32 1.0, %v409
        %s411 = smul.u32 %s29, 256
        %v412 = vlaneseq
        %v413 = vand.u32 %v412, 127
        %v414 = vadd.s32 %v413, 128
        %v415 = vstv %s411
        %v416 = vadd.s32 %v413, %v415
        %v417 = vadd.s32 %v414, %v415
        %vm418 = vcmp.lt.s32.totalorder %v416, 400
        %vm419 = vcmp.lt.s32.totalorder %v417, 400
        %v420 = vsel %vm418, 1, 0
        %v421 = vsel %vm419, 1, 0
        %v422 = vcvt.s32.f32 %v420
        %v423 = vcvt.s32.f32 %v421
        %v424 = vrot.slane %v360, 5
        %v425 = vrot.slane %v424, 4
        %v427 = vadd.f32 %v360, %v425
        %v428 = vrot.slane %v371, 4
        %v430 = vadd.f32 %v427, %v428
        %v431 = vrot.slane %v360, 7
        %v432 = vrot.slane %v431, 4
        %v434 = vadd.f32 %v430, %v432
        %vm435 = vcmp.ne.f32.partialorder %v434, 0.0
        %v436 = vsel %vm435, 1, 0
        %v437 = vcvt.s32.f32 %v436
        %v440 = vcombine.low %v422, %v423
        %v442 = vmul.f32 %v437, %v440
        %v443 = vld [vmem:[#allocation2] sm:$0x3]
        %v445 = vrot.slane %v410, 6
        %v446 = vrot.slane %v445, 4
        %v448 = vmul.f32 %v442, %v446
        %v451 = vunpack.c.l.s4 1966171168
        %v452 = vunpack.c.0.s8 %v451
        %v453 = vlaneseq
        %v454 = vshrl.u32 %v453, 7
        %v455 = vsub.s32 %v452, %v454
        %v456 = vrot.slane %v448, %v455
        %v458 = vunpack.c.l.s4 1966171168
        %v459 = vunpack.c.0.s8 %v458
        %v460 = vlaneseq
        %v461 = vshrl.u32 %v460, 7
        %v462 = vsub.s32 %v459, %v461
        %v463 = vrot.slane %v456, %v462
        %v465 = vadd.f32 %v443, %v463
        %v466 = vlaneseq
        %vm467 = vcmp.ge.s32.totalorder %v466, 0
        %vm468 = vcmp.lt.s32.totalorder %v466, 256
        %vm469 = vmand %vm467, %vm468
        %470 = vst.msk [vmem:[#allocation2] sm:$0x3] %vm469, %v465
        %v471 = vld [vmem:[#allocation3] sm:$0x3]
        %v474 = vunpack.c.l.s4 1966171168
        %v475 = vunpack.c.0.s8 %v474
        %v476 = vlaneseq
        %v477 = vshrl.u32 %v476, 7
        %v478 = vsub.s32 %v475, %v477
        %v479 = vrot.slane %v442, %v478
        %v481 = vunpack.c.l.s4 1966171168
        %v482 = vunpack.c.0.s8 %v481
        %v483 = vlaneseq
        %v484 = vshrl.u32 %v483, 7
        %v485 = vsub.s32 %v482, %v484
        %v486 = vrot.slane %v479, %v485
        %v488 = vadd.f32 %v471, %v486
        %489 = vst.msk [vmem:[#allocation3] sm:$0x3] %vm469, %v488
        %v490 = vld [vmem:[%s294] sm:$0xff]
        %v491 = vld [vmem:[%s294 + $0x8] sm:$0xff]
        %v492 = vunpack.c.l.bf16 %v490
        %v493 = vunpack.c.h.bf16 %v490
        %v494 = vunpack.c.l.bf16 %v491
        %v495 = vunpack.c.h.bf16 %v491
        %v496 = vld [vmem:[%s346] sm:$0x3]
        %v497 = vlaneseq
        %v498 = vshrl.u32 %v497, 7
        %v499 = vadd.s32 %v498, 8
        %v500 = vlaneseq
        %v501 = vshrl.u32 %v500, 7
        %v502 = vsub.s32 0, %v501
        %v503 = vrot.slane %v496, %v502
        %v504 = vlaneseq
        %v505 = vshrl.u32 %v504, 7
        %v506 = vsub.s32 1, %v505
        %v507 = vrot.slane %v496, %v506
        %vm508 = vcmp.eq.s32.totalorder %v498, %v503
        %vm509 = vcmp.eq.s32.totalorder %v498, %v507
        %vm510 = vcmp.eq.s32.totalorder %v499, %v503
        %vm511 = vcmp.eq.s32.totalorder %v499, %v507
        %v512 = vsel %vm508, 1, 0
        %v513 = vsel %vm509, 1, 0
        %v514 = vsel %vm510, 1, 0
        %v515 = vsel %vm511, 1, 0
        %v516 = vcvt.s32.f32 %v512
        %v517 = vcvt.s32.f32 %v513
        %v518 = vcvt.s32.f32 %v514
        %v519 = vcvt.s32.f32 %v515
        %v521 = vlaneseq
        %v522 = vshrl.u32 %v521, 7
        %v523 = vsub.s32 2, %v522
        %v524 = vrot.slane %v395, %v523
        %v525 = vlaneseq
        %v526 = vshrl.u32 %v525, 7
        %v527 = vsub.s32 6, %v526
        %v528 = vrot.slane %v395, %v527
        %v531 = vlaneseq
        %v532 = vshrl.u32 %v531, 7
        %v533 = vsub.s32 2, %v532
        %v534 = vrot.slane %v524, %v533
        %v535 = vlaneseq
        %v536 = vshrl.u32 %v535, 7
        %v537 = vsub.s32 2, %v536
        %v538 = vrot.slane %v528, %v537
        %v539 = vmul.f32 %v516, %v534
        %v540 = vmul.f32 %v517, %v538
        %v541 = vmul.f32 %v518, %v534
        %v542 = vmul.f32 %v519, %v538
        %v543 = vxor.u32 %v492, 2147483648
        %v544 = vxor.u32 %v493, 2147483648
        %v545 = vxor.u32 %v494, 2147483648
        %v546 = vxor.u32 %v495, 2147483648
        %v547 = vmul.f32 %v543, 1.442695
        %v548 = vpow.pop %v547
        %v549 = vmul.f32 %v544, 1.442695
        %v550 = vpow.pop %v549
        %v551 = vmul.f32 %v545, 1.442695
        %v552 = vpow.pop %v551
        %v553 = vmul.f32 %v546, 1.442695
        %v554 = vpow.pop %v553
        %v555 = vadd.f32 %v548, 1.0
        %v556 = vadd.f32 %v550, 1.0
        %v557 = vadd.f32 %v552, 1.0
        %v558 = vadd.f32 %v554, 1.0
        %v559 = vrcp.pop %v555
        %v560 = vmul.f32 1.0, %v559
        %v561 = vrcp.pop %v556
        %v562 = vmul.f32 1.0, %v561
        %v563 = vrcp.pop %v557
        %v564 = vmul.f32 1.0, %v563
        %v565 = vrcp.pop %v558
        %v566 = vmul.f32 1.0, %v565
        %vm567 = vcmp.ge.f32.partialorder %v492, 0.0
        %vm568 = vcmp.ge.f32.partialorder %v493, 0.0
        %vm569 = vcmp.ge.f32.partialorder %v494, 0.0
        %vm570 = vcmp.ge.f32.partialorder %v495, 0.0
        %v571 = vsub.f32 1.0, %v560
        %v572 = vsub.f32 1.0, %v562
        %v573 = vsub.f32 1.0, %v564
        %v574 = vsub.f32 1.0, %v566
        %v575 = vsel %vm567, %v560, %v571
        %v576 = vsel %vm568, %v562, %v572
        %v577 = vsel %vm569, %v564, %v573
        %v578 = vsel %vm570, %v566, %v574
        %v579 = vmax.f32 %v492, 0.0
        %v580 = vmax.f32 %v493, 0.0
        %v581 = vmax.f32 %v494, 0.0
        %v582 = vmax.f32 %v495, 0.0
        %v583 = vmul.f32 %v492, %v539
        %v584 = vmul.f32 %v493, %v540
        %v585 = vmul.f32 %v494, %v541
        %v586 = vmul.f32 %v495, %v542
        %v587 = vsub.f32 %v579, %v583
        %v588 = vsub.f32 %v580, %v584
        %v589 = vsub.f32 %v581, %v585
        %v590 = vsub.f32 %v582, %v586
        %v591 = vlog2.pop %v575
        %v592 = vmul.f32 %v591, 0.6931472
        %v593 = vlog2.pop %v576
        %v594 = vmul.f32 %v593, 0.6931472
        %v595 = vlog2.pop %v577
        %v596 = vmul.f32 %v595, 0.6931472
        %v597 = vlog2.pop %v578
        %v598 = vmul.f32 %v597, 0.6931472
        %v599 = vsub.f32 %v587, %v592
        %v600 = vsub.f32 %v588, %v594
        %v601 = vsub.f32 %v589, %v596
        %v602 = vsub.f32 %v590, %v598
        %v603 = vsub.f32 %v539, %v560
        %v604 = vsub.f32 %v540, %v562
        %v605 = vsub.f32 %v541, %v564
        %v606 = vsub.f32 %v542, %v566
        %v607 = vmul.f32 %v599, %v603
        %v608 = vmul.f32 %v600, %v604
        %v609 = vmul.f32 %v601, %v605
        %v610 = vmul.f32 %v602, %v606
        %v611 = vmul.f32 %v607, %v603
        %v612 = vmul.f32 %v608, %v604
        %v613 = vmul.f32 %v609, %v605
        %v614 = vmul.f32 %v610, %v606
        %v615 = vld [vmem:[#allocation4] sm:$0x3]
        %v616 = vadd.f32 %v611, %v613
        %v617 = vrot.slane %v616, 4
        %v618 = vadd.f32 %v616, %v617
        %v619 = vrot.slane %v618, 2
        %v620 = vadd.f32 %v618, %v619
        %v621 = vrot.slane %v620, 1
        %v622 = vadd.f32 %v620, %v621
        %v623 = vadd.f32 %v612, %v614
        %v624 = vrot.slane %v623, 4
        %v625 = vadd.f32 %v623, %v624
        %v626 = vrot.slane %v625, 2
        %v627 = vadd.f32 %v625, %v626
        %v628 = vrot.slane %v627, 1
        %v629 = vadd.f32 %v627, %v628
        %v630 = vmul.f32 %v422, %v622
        %v631 = vmul.f32 %v423, %v629
        %v634 = vcombine.low %v630, %v631
        %v636 = vunpack.c.l.s4 1966171168
        %v637 = vunpack.c.0.s8 %v636
        %v638 = vlaneseq
        %v639 = vshrl.u32 %v638, 7
        %v640 = vsub.s32 %v637, %v639
        %v641 = vrot.slane %v634, %v640
        %v643 = vunpack.c.l.s4 1966171168
        %v644 = vunpack.c.0.s8 %v643
        %v645 = vlaneseq
        %v646 = vshrl.u32 %v645, 7
        %v647 = vsub.s32 %v644, %v646
        %v648 = vrot.slane %v641, %v647
        %v650 = vadd.f32 %v615, %v648
        %651 = vst.msk [vmem:[#allocation4] sm:$0x3] %vm469, %v650
        %p652 = scmp.eq.s32.totalorder %s29, 1
        // Predicated region
        $region53: #{tpu_custom_call.1} parent=35 // pred_check
          %p653 = pneg %p652
        $region54: #{tpu_custom_call.1} parent=35 // pred_check_branch
          %655 = sbr.rel (%p653) target = $region56
        $region55: #{tpu_custom_call.1} parent=35 // pred_region
          %v656 = vld [vmem:[#allocation2] sm:$0x3]
          %v658 = vlaneseq
          %v659 = vshrl.u32 %v658, 7
          %v660 = vsub.s32 0, %v659
          %v661 = vrot.slane %v656, %v660
          %v662 = vlaneseq
          %v663 = vshrl.u32 %v662, 7
          %v664 = vsub.s32 1, %v663
          %v665 = vrot.slane %v656, %v664
          %vm668 = vcmask 1040384
          %v669 = vsel %vm668, %v661, 0.0
          %v670 = vsel %vm668, %v665, 0.0
          %v671 = vadd.f32 %v669, %v670
          %672 = vadd.xlane.f32.xlu0 %v671
          %v673 = vpop.xlane.xlu0 %672
          %v674 = vld [vmem:[#allocation3] sm:$0x3]
          %v676 = vlaneseq
          %v677 = vshrl.u32 %v676, 7
          %v678 = vsub.s32 0, %v677
          %v679 = vrot.slane %v674, %v678
          %v680 = vlaneseq
          %v681 = vshrl.u32 %v680, 7
          %v682 = vsub.s32 1, %v681
          %v683 = vrot.slane %v674, %v682
          %v686 = vsel %vm668, %v679, 0.0
          %v687 = vsel %vm668, %v683, 0.0
          %v688 = vadd.f32 %v686, %v687
          %689 = vadd.xlane.f32.xlu0 %v688
          %v690 = vpop.xlane.xlu0 %689
          %v691 = vmax.f32 %v690, 1.0
          %v692 = vld [vmem:[#allocation4] sm:$0x3]
          %v694 = vlaneseq
          %v695 = vshrl.u32 %v694, 7
          %v696 = vsub.s32 0, %v695
          %v697 = vrot.slane %v692, %v696
          %v698 = vlaneseq
          %v699 = vshrl.u32 %v698, 7
          %v700 = vsub.s32 1, %v699
          %v701 = vrot.slane %v692, %v700
          %v704 = vsel %vm668, %v697, 0.0
          %v705 = vsel %vm668, %v701, 0.0
          %v706 = vadd.f32 %v704, %v705
          %707 = vadd.xlane.f32.xlu0 %v706
          %v708 = vpop.xlane.xlu0 %707
          %v709 = vmul.f32 %v673, 2.0
          %v710 = vadd.f32 %v709, %v708
          %v711 = vrcp.pop %v691
          %v712 = vmul.f32 %v710, %v711
          %713 = vst [vmem:[%s335] sm:$0x1] %v712
        $region56: #{tpu_custom_call.1} parent=35 // pred_fallthru
          _
        %s714 = sand.u32 %s156, 1
        %s715 = scalar_lea.sflag [#allocation7], %s714
        %s716 = sand.u32 %s156, 1
        %s717 = scalar_lea.vmem [#allocation11], %s716
        // Predicated region
        $region57: #{tpu_custom_call.1} parent=35 // pred_check
          %p718 = pneg %p166
        $region58: #{tpu_custom_call.1} parent=35 // pred_check_branch
          %720 = sbr.rel (%p718) target = $region60
        $region59: #{tpu_custom_call.1} parent=35 // pred_region
          %s722 = ssub.s32 16, 16
          %723 = vsyncadd %s715, %s722
          %s724 = smul.addr %s28, 16
          %s725 = scalar_lea.hbm %s4, %s724
          %s727 = sshll.u32 %s717, 4
          %s728 = int_to_ptr.vmem [resolvable:$true] %s727
          %730 = dma.vmem_to_hbm [thread:$0]  %s728, 16, %s725, %s715
        $region60: #{tpu_custom_call.1} parent=35 // pred_fallthru
          _
      $region36: #{tpu_custom_call.1} parent=5 // pred_fallthru
        _
      %p731 = scmp.le.s32.totalorder 2, %s19
      // Predicated region
      $region61: #{tpu_custom_call.1} parent=5 // pred_check
        %p732 = pneg %p731
      $region62: #{tpu_custom_call.1} parent=5 // pred_check_branch
        %734 = sbr.rel (%p732) target = $region64
      $region63: #{tpu_custom_call.1} parent=5 // pred_region
        %s735 = ssub.s32 %s19, 2
        // Predicated region
        $region65: #{tpu_custom_call.1} parent=63 // pred_check
          %p736 = pneg %p172
        $region66: #{tpu_custom_call.1} parent=63 // pred_check_branch
          %738 = sbr.rel (%p736) target = $region68
        $region67: #{tpu_custom_call.1} parent=63 // pred_region
          %s739 = sand.u32 %s157, 1
          %s740 = scalar_lea.sflag [#allocation7], %s739
          %s741 = sand.u32 %s157, 1
          %s742 = scalar_lea.vmem [#allocation11], %s741
          %743 = dma.done %s740, 16
        $region68: #{tpu_custom_call.1} parent=63 // pred_fallthru
          _
      $region64: #{tpu_custom_call.1} parent=5 // pred_fallthru
        _
    $region6: #{tpu_custom_call.1} parent=1 // loop_footer
      %s23 = sadd.s32 1, %s19
    $region7: #{tpu_custom_call.1} parent=1 // loop_footer_branch
      %18 = sbr.rel target = $region3
    $region8: #{tpu_custom_call.1} parent=1 // loop_exit
      _
    %744 = vsyncpa [#allocation6], 1
    %s745 = scalar_lea.sflag [#allocation6], 1
    %746 = vsyncpa %s745, 1
    %747 = vsyncpa [#allocation9], 1
    %s748 = scalar_lea.sflag [#allocation9], 1
    %749 = vsyncpa %s748, 1
    %750 = vsyncpa [#allocation7], 1
    %s751 = scalar_lea.sflag [#allocation7], 1
    %752 = vsyncpa %s751, 1

</llo_original>
